<compile_context>
chip_gen: v5e
topology: v5e:2x2
jax: 0.10.0
libtpu: 0.0.40
codegen_flags: <defaults>
</compile_context>

<pallas_src>
import functools

import jax
import jax.numpy as jnp
from jax import lax
from jax.experimental import pallas as pl
from jax.experimental.pallas import tpu as pltpu

BN_EPS = 1e-5
LANE = 128
SUBLANE = 8


def _round_up(v, m):
    return (v + m - 1) // m * m


def _cdiv(a, b):
    return (a + b - 1) // b


def _softplus(v):
    # Numerically-stable softplus (nn.Softplus, beta=1) in v's dtype.
    return jnp.maximum(v, 0.0) + jnp.log1p(jnp.exp(-jnp.abs(v)))


def _mlp_head(h0, b0_ref, w1_ref, b1_ref, wh_ref, sp_dtype):
    """softplus MLP tail + fused (mu|sigma) head matmul from the f32 h0 acc.

    Returns the PRE-BIAS head (bias added by callers); BN statistics are
    accumulated on this shifted value (shift-by-bias pivot).
    """
    h = _softplus((h0 + b0_ref[...]).astype(sp_dtype))
    z = (jnp.dot(h.astype(w1_ref.dtype), w1_ref[...],
                 preferred_element_type=jnp.float32) + b1_ref[...])
    h = _softplus(z.astype(sp_dtype))
    return jnp.dot(h.astype(wh_ref.dtype), wh_ref[...],
                   preferred_element_type=jnp.float32)


def _fused_kernel(x_ref, w0_ref, b0_ref, w1_ref, b1_ref, wh_ref, bh_ref,
                  out_ref, h0_acc, *, n_valid, n_rows, sp_dtype):
    """Single-batch-tile path: MLP + fused head + in-kernel BatchNorm."""
    k = pl.program_id(0)

    @pl.when(k == 0)
    def _():
        h0_acc[...] = jnp.zeros_like(h0_acc)

    # input_layer, k-tiled over the (padded) input dim; f32 accumulation.
    h0_acc[...] += jnp.dot(x_ref[...], w0_ref[...],
                           preferred_element_type=jnp.float32)

    @pl.when(k == pl.num_programs(0) - 1)
    def _():
        hd = _mlp_head(h0_acc[...], b0_ref, w1_ref, b1_ref, wh_ref, sp_dtype)
        head = hd + bh_ref[...]
        stats_src = hd
        if n_rows != n_valid:            # static: mask zero-padded batch rows
            rows = lax.broadcasted_iota(jnp.int32, hd.shape, 0)
            stats_src = jnp.where(rows < n_valid, hd, 0.0)
        inv_n = jnp.float32(1.0 / n_valid)
        m0 = jnp.sum(stats_src, axis=0, keepdims=True) * inv_n
        msq = jnp.sum(stats_src * stats_src, axis=0, keepdims=True) * inv_n
        mean = bh_ref[...] + m0                      # shift-by-bias pivot
        var = jnp.maximum(msq - m0 * m0, 0.0)
        out_ref[...] = (head - mean) * lax.rsqrt(var + BN_EPS)


def _encode_kernel(x_ref, w0_ref, b0_ref, w1_ref, b1_ref, wh_ref, bh_ref,
                   head_ref, psum_ref, psumsq_ref, h0_acc,
                   *, block_m, n_valid, has_pad, sp_dtype):
    """Pass 1 (multi batch tile): MLP + fused head + per-tile partial stats."""
    i = pl.program_id(0)
    k = pl.program_id(1)

    @pl.when(k == 0)
    def _():
        h0_acc[...] = jnp.zeros_like(h0_acc)

    h0_acc[...] += jnp.dot(x_ref[...], w0_ref[...],
                           preferred_element_type=jnp.float32)

    @pl.when(k == pl.num_programs(1) - 1)
    def _():
        hd = _mlp_head(h0_acc[...], b0_ref, w1_ref, b1_ref, wh_ref, sp_dtype)
        head_ref[...] = hd + bh_ref[...]

        def write_stats(v):
            psum_ref[...] = jnp.sum(
                v, axis=0, keepdims=True).reshape(psum_ref.shape)
            psumsq_ref[...] = jnp.sum(
                v * v, axis=0, keepdims=True).reshape(psumsq_ref.shape)

        if has_pad:
            last_i = pl.num_programs(0) - 1

            @pl.when(i == last_i)        # mask only on the last batch tile
            def _():
                rows = i * block_m + lax.broadcasted_iota(
                    jnp.int32, hd.shape, 0)
                write_stats(jnp.where(rows < n_valid, hd, 0.0))

            @pl.when(i != last_i)
            def _():
                write_stats(hd)
        else:
            write_stats(hd)


def _normalize_kernel(head_ref, hsum_ref, hsumsq_ref, bh_ref, out_ref,
                      *, n_valid):
    """Pass 2: BatchNorm1d(affine=False) with the global batch statistics."""
    inv_n = jnp.float32(1.0 / n_valid)
    m0 = hsum_ref[...] * inv_n
    mean = bh_ref[...] + m0
    var = jnp.maximum(hsumsq_ref[...] * inv_n - m0 * m0, 0.0)
    out_ref[...] = (head_ref[...] - mean) * lax.rsqrt(var + BN_EPS)


def _pick_rows2(bp, tm, lanes):
    """Pass-2 row tile: largest multiple of tm dividing bp, capped ~2-4 MiB."""
    cap = max(tm, min(4096, (4 << 20) // (lanes * 4)))
    best = tm
    n_tiles = bp // tm
    for d in range(1, n_tiles + 1):
        if n_tiles % d == 0 and tm * d <= cap:
            best = tm * d
    return best


def prodlda_infer(x, w0, b0, w1, b1, wmu, bmu, wsig, bsig, *,
                  matmul_dtype=jnp.bfloat16, softplus_dtype=None,
                  block_m=None, block_k=2048, vmem_budget=40 << 20):
    """Forward of ProdLDA_infer -> (mu, log_sigma).

    matmul_dtype=float32 reproduces the PyTorch f32 forward; bfloat16 is the
    MXU-native performance path (f32 accumulation, f32 batch-norm).  softplus
    runs in `softplus_dtype or matmul_dtype` (bf16 EUP on v6e/v7x).
    """
    f32 = jnp.float32
    sp_dtype = softplus_dtype or matmul_dtype

    B, IN = x.shape
    H0 = w0.shape[1]
    H1 = w1.shape[1]
    K = wmu.shape[1]

    if block_m is None:
        try:
            kind = jax.devices()[0].device_kind.lower()
        except Exception:
            kind = ""
        # v6e: 128 MiB VMEM + 256-wide MXU -> bigger batch tiles pay off.
        block_m = 512 if "v6" in kind else 256

    H0p = _round_up(H0, LANE)
    H1p = _round_up(H1, LANE)
    Np = _round_up(2 * K, LANE)

    itemsize = jnp.dtype(matmul_dtype).itemsize

    # ---- tile selection against an explicit VMEM budget --------------------
    tm = min(_round_up(block_m, SUBLANE), _round_up(B, SUBLANE))

    INp0 = _round_up(IN, LANE)
    tk = max(LANE, _round_up(min(block_k, INp0), LANE))
    grid_k = _cdiv(INp0, tk)
    tk = _round_up(_cdiv(INp0, grid_k), LANE)

    def vmem_est(tm_, tk_):
        est = 2 * tm_ * tk_ * itemsize                    # x (double-buffered)
        est += 2 * tk_ * H0p * itemsize                   # w0 (double-buffered)
        est += 2 * (H0p * H1p + H1p * Np) * itemsize      # w1, wh
        est += 2 * (H0p + H1p + Np) * 4                   # biases (f32)
        est += tm_ * H0p * 4                              # h0 accumulator
        est += 2 * tm_ * Np * 4                           # head / out
        est += tm_ * (H0p + H1p) * itemsize + 2 * tm_ * Np * 4   # temporaries
        return est

    while vmem_est(tm, tk) > vmem_budget and tk > LANE:
        tk = max(LANE, (tk // 2) // LANE * LANE)
    while vmem_est(tm, tk) > vmem_budget and tm > SUBLANE:
        tm = max(SUBLANE, (tm // 2) // SUBLANE * SUBLANE)

    grid_k = _cdiv(INp0, tk)
    INp = grid_k * tk                 # pad input dim to a multiple of tk
    bp = _round_up(B, tm)
    grid_m = bp // tm

    # Explicit scoped-VMEM limit (defaults: 16 MiB v5e, 32 MiB v6e/v7x).
    vmem_limit = int(min(max(int(vmem_est(tm, tk) * 1.3) + (4 << 20),
                             32 << 20), 56 << 20))

    # ---- padding: cast BEFORE padding (no full-size padded f32 copy) -------
    # Zero pads are exact in any dtype, so padded lanes/rows contribute 0.
    def pad2(a, rows, cols, dt):
        a = a.astype(dt)
        pr, pc = rows - a.shape[0], cols - a.shape[1]
        return jnp.pad(a, ((0, pr), (0, pc))) if (pr or pc) else a

    x_p = pad2(x, bp, INp, matmul_dtype)
    w0_p = pad2(w0, INp, H0p, matmul_dtype)
    w1_p = pad2(w1, H0p, H1p, matmul_dtype)
    wh_p = pad2(jnp.concatenate([wmu, wsig], axis=1), H1p, Np, matmul_dtype)
    b0_p = pad2(b0.reshape(1, -1), 1, H0p, f32)
    b1_p = pad2(b1.reshape(1, -1), 1, H1p, f32)
    bh_p = pad2(jnp.concatenate([bmu.reshape(1, -1), bsig.reshape(1, -1)],
                                axis=1), 1, Np, f32)

    flops = 2 * bp * (INp * H0p + H0p * H1p + H1p * Np)
    transcendentals = 2 * bp * (H0p + H1p)        # exp + log1p per softplus
    bytes_accessed = (bp * INp * itemsize
                      + grid_m * (INp * H0p + H0p * H1p + H1p * Np) * itemsize
                      + grid_m * (H0p + H1p + Np) * 4
                      + bp * Np * 4 + 2 * grid_m * Np * 4)
    cost = pl.CostEstimate(flops=flops, transcendentals=transcendentals,
                           bytes_accessed=bytes_accessed)

    if grid_m == 1:
        # Fused path: stats + normalization in-kernel, one pallas_call.
        normed = pl.pallas_call(
            functools.partial(_fused_kernel, n_valid=B, n_rows=bp,
                              sp_dtype=sp_dtype),
            grid=(grid_k,),
            in_specs=[
                pl.BlockSpec((tm, tk), lambda k: (0, k)),
                pl.BlockSpec((tk, H0p), lambda k: (k, 0)),
                pl.BlockSpec((1, H0p), lambda k: (0, 0)),
                pl.BlockSpec((H0p, H1p), lambda k: (0, 0)),
                pl.BlockSpec((1, H1p), lambda k: (0, 0)),
                pl.BlockSpec((H1p, Np), lambda k: (0, 0)),
                pl.BlockSpec((1, Np), lambda k: (0, 0)),
            ],
            out_specs=pl.BlockSpec((tm, Np), lambda k: (0, 0)),
            out_shape=jax.ShapeDtypeStruct((bp, Np), f32),
            scratch_shapes=[pltpu.VMEM((tm, H0p), f32)],
            compiler_params=pltpu.CompilerParams(
                dimension_semantics=("arbitrary",),
                vmem_limit_bytes=vmem_limit),
            cost_estimate=cost,
        )(x_p, w0_p, b0_p, w1_p, b1_p, wh_p, bh_p)
    else:
        # Pass 1: MLP + fused head per batch tile (parallel over batch tiles,
        # arbitrary over the input-reduction axis) + per-tile partial stats.
        head, psum, psumsq = pl.pallas_call(
            functools.partial(_encode_kernel, block_m=tm, n_valid=B,
                              has_pad=(bp != B), sp_dtype=sp_dtype),
            grid=(grid_m, grid_k),
            in_specs=[
                pl.BlockSpec((tm, tk), lambda i, k: (i, k)),
                pl.BlockSpec((tk, H0p), lambda i, k: (k, 0)),
                pl.BlockSpec((1, H0p), lambda i, k: (0, 0)),
                pl.BlockSpec((H0p, H1p), lambda i, k: (0, 0)),
                pl.BlockSpec((1, H1p), lambda i, k: (0, 0)),
                pl.BlockSpec((H1p, Np), lambda i, k: (0, 0)),
                pl.BlockSpec((1, Np), lambda i, k: (0, 0)),
            ],
            out_specs=(
                pl.BlockSpec((tm, Np), lambda i, k: (i, 0)),
                pl.BlockSpec((1, 1, Np), lambda i, k: (i, 0, 0)),
                pl.BlockSpec((1, 1, Np), lambda i, k: (i, 0, 0)),
            ),
            out_shape=(
                jax.ShapeDtypeStruct((bp, Np), f32),
                jax.ShapeDtypeStruct((grid_m, 1, Np), f32),
                jax.ShapeDtypeStruct((grid_m, 1, Np), f32),
            ),
            scratch_shapes=[pltpu.VMEM((tm, H0p), f32)],
            compiler_params=pltpu.CompilerParams(
                dimension_semantics=("parallel", "arbitrary"),
                vmem_limit_bytes=vmem_limit),
            cost_estimate=cost,
        )(x_p, w0_p, b0_p, w1_p, b1_p, wh_p, bh_p)

        # Tiny cross-tile reduction of the per-tile partial statistics.
        hsum = jnp.sum(psum, axis=0)         # (1, Np)
        hsumsq = jnp.sum(psumsq, axis=0)     # (1, Np)

        # Pass 2: apply the global batch-norm (large lane-dense row tiles).
        rows2 = _pick_rows2(bp, tm, Np)
        normed = pl.pallas_call(
            functools.partial(_normalize_kernel, n_valid=B),
            grid=(bp // rows2,),
            in_specs=[
                pl.BlockSpec((rows2, Np), lambda i: (i, 0)),
                pl.BlockSpec((1, Np), lambda i: (0, 0)),
                pl.BlockSpec((1, Np), lambda i: (0, 0)),
                pl.BlockSpec((1, Np), lambda i: (0, 0)),
            ],
            out_specs=pl.BlockSpec((rows2, Np), lambda i: (i, 0)),
            out_shape=jax.ShapeDtypeStruct((bp, Np), f32),
            compiler_params=pltpu.CompilerParams(
                dimension_semantics=("parallel",),
                vmem_limit_bytes=32 << 20),
        )(head, hsum, hsumsq, bh_p)

    mu = normed[:B, :K]
    log_sigma = normed[:B, K:2 * K]
    return mu, log_sigma


def _ref_forward(x, w0, b0, w1, b1, wmu, bmu, wsig, bsig,
                 matmul_dtype=jnp.float32, softplus_dtype=None):
    """Pure-JAX reference with the same quantization choices as the kernel."""
    md = matmul_dtype
    sd = softplus_dtype or matmul_dtype

    def mm(a, w):
        return jnp.dot(a.astype(md), w.astype(md),
                       preferred_element_type=jnp.float32)

    h = _softplus((mm(x, w0) + b0.reshape(1, -1)).astype(sd))
    h = _softplus((mm(h, w1) + b1.reshape(1, -1)).astype(sd))

    def bn(v):
        m = v.mean(axis=0, keepdims=True)
        var = ((v - m) ** 2).mean(axis=0, keepdims=True)
        return (v - m) / jnp.sqrt(var + BN_EPS)

    mu = bn(mm(h, wmu) + bmu.reshape(1, -1))
    log_sigma = bn(mm(h, wsig) + bsig.reshape(1, -1))
    return mu, log_sigma


if __name__ == "__main__":
    # Shapes consistent with the module: batch=8, input_size=32,
    # hidden_sizes=(64, 32), output_size=16.
    B, IN, H0, H1, K = 8, 32, 64, 32, 16

    key = jax.random.PRNGKey(0)
    keys = jax.random.split(key, 12)
    x = jax.random.normal(keys[0], (B, IN), jnp.float32)

    w0 = jax.random.normal(keys[1], (IN, H0), jnp.float32) * 0.1
    b0 = jax.random.normal(keys[2], (1, H0), jnp.float32) * 0.1
    w1 = jax.random.normal(keys[3], (H0, H1), jnp.float32) * 0.1
    b1 = jax.random.normal(keys[4], (1, H1), jnp.float32) * 0.1
    wmu = jax.random.normal(keys[5], (H1, K), jnp.float32) * 0.1
    bmu = jax.random.normal(keys[6], (1, K), jnp.float32) * 0.1
    wsig = jax.random.normal(keys[7], (H1, K), jnp.float32) * 0.1
    bsig = jax.random.normal(keys[8], (1, K), jnp.float32) * 0.1
    params = (w0, b0, w1, b1, wmu, bmu, wsig, bsig)

    # 1) Exact f32 path, fused single-call kernel (grid_m == 1).
    mu32, ls32 = prodlda_infer(x, *params, matmul_dtype=jnp.float32)
    jax.block_until_ready((mu32, ls32))
    mu_r, ls_r = _ref_forward(x, *params, matmul_dtype=jnp.float32)
    assert mu32.shape == (B, K) and ls32.shape == (B, K)
    assert jnp.allclose(mu32, mu_r, atol=1e-4, rtol=1e-4)
    assert jnp.allclose(ls32, ls_r, atol=1e-4, rtol=1e-4)

    # 2a) bf16 MXU operands + f32 softplus: tight check vs. the equally
    #     quantized reference (f32 accumulation / f32 batch-norm in both).
    mu16, ls16 = prodlda_infer(x, *params, matmul_dtype=jnp.bfloat16,
                               softplus_dtype=jnp.float32)
    jax.block_until_ready((mu16, ls16))
    mu_r16, ls_r16 = _ref_forward(x, *params, matmul_dtype=jnp.bfloat16,
                                  softplus_dtype=jnp.float32)
    assert jnp.allclose(mu16, mu_r16, atol=2e-3, rtol=2e-3)
    assert jnp.allclose(ls16, ls_r16, atol=2e-3, rtol=2e-3)

    # 2b) Default fast path: bf16 softplus too (packed-bf16 EUP on v6e/v7x).
    #     bf16 transcendental rounding may differ between the EUP and XLA and
    #     the batch-norm divides by small batch stds, so only a loose sanity
    #     check against the f32 reference is meaningful here.
    mu_fast, ls_fast = prodlda_infer(x, *params, matmul_dtype=jnp.bfloat16)
    jax.block_until_ready((mu_fast, ls_fast))
    assert mu_fast.shape == (B, K) and ls_fast.shape == (B, K)
    assert bool(jnp.all(jnp.isfinite(mu_fast)) & jnp.all(jnp.isfinite(ls_fast)))
    assert float(jnp.mean(jnp.abs(mu_fast - mu_r))) < 0.1
    assert float(jnp.mean(jnp.abs(ls_fast - ls_r))) < 0.1

    # 3) Multi-tile batch grid: two-pass global BN, per-tile partial stats,
    #    padded-row masking only on the last tile (B2 % block_m != 0).
    B2 = 20
    x2 = jax.random.normal(keys[9], (B2, IN), jnp.float32)
    mu_t, ls_t = prodlda_infer(x2, *params, matmul_dtype=jnp.float32,
                               block_m=8)
    jax.block_until_ready((mu_t, ls_t))
    mu_rt, ls_rt = _ref_forward(x2, *params, matmul_dtype=jnp.float32)
    assert mu_t.shape == (B2, K) and ls_t.shape == (B2, K)
    assert jnp.allclose(mu_t, mu_rt, atol=1e-4, rtol=1e-4)
    assert jnp.allclose(ls_t, ls_rt, atol=1e-4, rtol=1e-4)

    # 4) k-tiled input dim (grid_k > 1): both the two-pass and the fused path.
    IN2 = 200
    w0b = jax.random.normal(keys[10], (IN2, H0), jnp.float32) * 0.1
    params_b = (w0b, b0, w1, b1, wmu, bmu, wsig, bsig)
    x3 = jax.random.normal(keys[11], (B2, IN2), jnp.float32)
    mu_k, ls_k = prodlda_infer(x3, *params_b, matmul_dtype=jnp.float32,
                               block_m=8, block_k=128)   # grid_m=3, grid_k=2
    mu_kf, ls_kf = prodlda_infer(x3[:B], *params_b, matmul_dtype=jnp.float32,
                                 block_k=128)            # fused, grid_k=2
    jax.block_until_ready((mu_k, ls_k, mu_kf, ls_kf))
    mu_rk, ls_rk = _ref_forward(x3, *params_b, matmul_dtype=jnp.float32)
    mu_rkf, ls_rkf = _ref_forward(x3[:B], *params_b, matmul_dtype=jnp.float32)
    assert jnp.allclose(mu_k, mu_rk, atol=1e-4, rtol=1e-4)
    assert jnp.allclose(ls_k, ls_rk, atol=1e-4, rtol=1e-4)
    assert jnp.allclose(mu_kf, mu_rkf, atol=1e-4, rtol=1e-4)
    assert jnp.allclose(ls_kf, ls_rkf, atol=1e-4, rtol=1e-4)

    print("KERNEL_OK")
</pallas_src>

<mosaic_0001>
module attributes {stable_mosaic.version = 11 : i64} {
  func.func @_fused_kernel(%arg0: i32, %arg1: memref<8x128xf32, #tpu.memory_space<vmem>>, %arg2: memref<128x128xf32, #tpu.memory_space<vmem>>, %arg3: memref<1x128xf32, #tpu.memory_space<vmem>>, %arg4: memref<128x128xf32, #tpu.memory_space<vmem>>, %arg5: memref<1x128xf32, #tpu.memory_space<vmem>>, %arg6: memref<128x128xf32, #tpu.memory_space<vmem>>, %arg7: memref<1x128xf32, #tpu.memory_space<vmem>>, %arg8: memref<8x128xf32, #tpu.memory_space<vmem>>, %arg9: memref<8x128xf32, #tpu.memory_space<vmem>>) attributes {dimension_semantics = [#tpu.dimension_semantics<arbitrary>], iteration_bounds = array<i64: 1>, scalar_prefetch = 0 : i64, scratch_operands = 1 : i64, tpu.core_type = #tpu.core_type<tc>, window_params = [{transform_indices = @transform_0, window_bounds = array<i64: 8, 128>}, {transform_indices = @transform_1, window_bounds = array<i64: 128, 128>}, {pipeline_mode = #tpu.pipeline_mode<synchronous>, transform_indices = @transform_2, window_bounds = array<i64: 1, 128>}, {pipeline_mode = #tpu.pipeline_mode<synchronous>, transform_indices = @transform_3, window_bounds = array<i64: 128, 128>}, {pipeline_mode = #tpu.pipeline_mode<synchronous>, transform_indices = @transform_4, window_bounds = array<i64: 1, 128>}, {pipeline_mode = #tpu.pipeline_mode<synchronous>, transform_indices = @transform_5, window_bounds = array<i64: 128, 128>}, {pipeline_mode = #tpu.pipeline_mode<synchronous>, transform_indices = @transform_6, window_bounds = array<i64: 1, 128>}, {pipeline_mode = #tpu.pipeline_mode<synchronous>, transform_indices = @transform_7, window_bounds = array<i64: 8, 128>}]} {
    %c0_i32 = arith.constant 0 : i32
    %0 = arith.cmpi eq, %arg0, %c0_i32 : i32
    %1 = arith.extui %0 : i1 to i32
    %c0_i32_0 = arith.constant 0 : i32
    %2 = arith.cmpi ne, %1, %c0_i32_0 : i32
    scf.if %2 {
      %cst_10 = arith.constant 0.000000e+00 : f32
      %12 = vector.broadcast %cst_10 : f32 to vector<8x128xf32>
      %c0_11 = arith.constant 0 : index
      %c0_12 = arith.constant 0 : index
      %13 = vector.load %arg9[%c0_11, %c0_12] : memref<8x128xf32, #tpu.memory_space<vmem>>, vector<8x128xf32>
      tpu.vector_store %arg9[%c0_11, %c0_12], %12 {strides = array<i32>} : memref<8x128xf32, #tpu.memory_space<vmem>>, vector<8x128xf32>,
    } else {
    }
    %c0 = arith.constant 0 : index
    %c0_1 = arith.constant 0 : index
    %3 = vector.load %arg9[%c0, %c0_1] : memref<8x128xf32, #tpu.memory_space<vmem>>, vector<8x128xf32>
    %c0_2 = arith.constant 0 : index
    %c0_3 = arith.constant 0 : index
    %4 = vector.load %arg1[%c0_2, %c0_3] : memref<8x128xf32, #tpu.memory_space<vmem>>, vector<8x128xf32>
    %c0_4 = arith.constant 0 : index
    %c0_5 = arith.constant 0 : index
    %5 = vector.load %arg2[%c0_4, %c0_5] : memref<128x128xf32, #tpu.memory_space<vmem>>, vector<128x128xf32>
    %cst = arith.constant dense<0.000000e+00> : vector<8x128xf32>
    %6 = tpu.matmul %4, %5, %cst {dimension_numbers = #tpu.dot_dimension_numbers<[1], [0], [0], [1], [0, 0, 1, 1], [], []>} : vector<8x128xf32>, vector<128x128xf32>, vector<8x128xf32> -> vector<8x128xf32>
    %7 = arith.addf %3, %6 : vector<8x128xf32>
    %c0_6 = arith.constant 0 : index
    %c0_7 = arith.constant 0 : index
    %8 = vector.load %arg9[%c0_6, %c0_7] : memref<8x128xf32, #tpu.memory_space<vmem>>, vector<8x128xf32>
    tpu.vector_store %arg9[%c0_6, %c0_7], %7 {strides = array<i32>} : memref<8x128xf32, #tpu.memory_space<vmem>>, vector<8x128xf32>,
    %c0_i32_8 = arith.constant 0 : i32
    %9 = arith.cmpi eq, %arg0, %c0_i32_8 : i32
    %10 = arith.extui %9 : i1 to i32
    %c0_i32_9 = arith.constant 0 : i32
    %11 = arith.cmpi ne, %10, %c0_i32_9 : i32
    scf.if %11 {
      %c0_10 = arith.constant 0 : index
      %c0_11 = arith.constant 0 : index
      %12 = vector.load %arg9[%c0_10, %c0_11] : memref<8x128xf32, #tpu.memory_space<vmem>>, vector<8x128xf32>
      %c0_12 = arith.constant 0 : index
      %c0_13 = arith.constant 0 : index
      %13 = vector.load %arg3[%c0_12, %c0_13] : memref<1x128xf32, #tpu.memory_space<vmem>>, vector<1x128xf32>
      %14 = vector.broadcast %13 : vector<1x128xf32> to vector<8x128xf32>
      %15 = arith.addf %12, %14 : vector<8x128xf32>
      %cst_14 = arith.constant 0.000000e+00 : f32
      %16 = vector.broadcast %cst_14 : f32 to vector<8x128xf32>
      %17 = arith.maximumf %15, %16 : vector<8x128xf32>
      %18 = math.absf %15 : vector<8x128xf32>
      %cst_15 = arith.constant 0.000000e+00 : f32
      %19 = vector.broadcast %cst_15 : f32 to vector<8x128xf32>
      %20 = arith.subf %19, %18 : vector<8x128xf32>
      %21 = math.exp %20 : vector<8x128xf32>
      %22 = math.log1p %21 : vector<8x128xf32>
      %23 = arith.addf %17, %22 : vector<8x128xf32>
      %c0_16 = arith.constant 0 : index
      %c0_17 = arith.constant 0 : index
      %24 = vector.load %arg4[%c0_16, %c0_17] : memref<128x128xf32, #tpu.memory_space<vmem>>, vector<128x128xf32>
      %cst_18 = arith.constant dense<0.000000e+00> : vector<8x128xf32>
      %25 = tpu.matmul %23, %24, %cst_18 {dimension_numbers = #tpu.dot_dimension_numbers<[1], [0], [0], [1], [0, 0, 1, 1], [], []>} : vector<8x128xf32>, vector<128x128xf32>, vector<8x128xf32> -> vector<8x128xf32>
      %c0_19 = arith.constant 0 : index
      %c0_20 = arith.constant 0 : index
      %26 = vector.load %arg5[%c0_19, %c0_20] : memref<1x128xf32, #tpu.memory_space<vmem>>, vector<1x128xf32>
      %27 = vector.broadcast %26 : vector<1x128xf32> to vector<8x128xf32>
      %28 = arith.addf %25, %27 : vector<8x128xf32>
      %cst_21 = arith.constant 0.000000e+00 : f32
      %29 = vector.broadcast %cst_21 : f32 to vector<8x128xf32>
      %30 = arith.maximumf %28, %29 : vector<8x128xf32>
      %31 = math.absf %28 : vector<8x128xf32>
      %cst_22 = arith.constant 0.000000e+00 : f32
      %32 = vector.broadcast %cst_22 : f32 to vector<8x128xf32>
      %33 = arith.subf %32, %31 : vector<8x128xf32>
      %34 = math.exp %33 : vector<8x128xf32>
      %35 = math.log1p %34 : vector<8x128xf32>
      %36 = arith.addf %30, %35 : vector<8x128xf32>
      %c0_23 = arith.constant 0 : index
      %c0_24 = arith.constant 0 : index
      %37 = vector.load %arg6[%c0_23, %c0_24] : memref<128x128xf32, #tpu.memory_space<vmem>>, vector<128x128xf32>
      %cst_25 = arith.constant dense<0.000000e+00> : vector<8x128xf32>
      %38 = tpu.matmul %36, %37, %cst_25 {dimension_numbers = #tpu.dot_dimension_numbers<[1], [0], [0], [1], [0, 0, 1, 1], [], []>} : vector<8x128xf32>, vector<128x128xf32>, vector<8x128xf32> -> vector<8x128xf32>
      %c0_26 = arith.constant 0 : index
      %c0_27 = arith.constant 0 : index
      %39 = vector.load %arg7[%c0_26, %c0_27] : memref<1x128xf32, #tpu.memory_space<vmem>>, vector<1x128xf32>
      %40 = vector.broadcast %39 : vector<1x128xf32> to vector<8x128xf32>
      %41 = arith.addf %38, %40 : vector<8x128xf32>
      %cst_28 = arith.constant dense<0.000000e+00> : vector<128xf32>
      %42 = vector.multi_reduction <add>, %38, %cst_28 [0] : vector<8x128xf32> to vector<128xf32>
      %43 = vector.shape_cast %42 : vector<128xf32> to vector<1x128xf32>
      %cst_29 = arith.constant 1.250000e-01 : f32
      %44 = vector.broadcast %cst_29 : f32 to vector<1x128xf32>
      %45 = arith.mulf %43, %44 : vector<1x128xf32>
      %46 = arith.mulf %38, %38 : vector<8x128xf32>
      %cst_30 = arith.constant dense<0.000000e+00> : vector<128xf32>
      %47 = vector.multi_reduction <add>, %46, %cst_30 [0] : vector<8x128xf32> to vector<128xf32>
      %48 = vector.shape_cast %47 : vector<128xf32> to vector<1x128xf32>
      %cst_31 = arith.constant 1.250000e-01 : f32
      %49 = vector.broadcast %cst_31 : f32 to vector<1x128xf32>
      %50 = arith.mulf %48, %49 : vector<1x128xf32>
      %c0_32 = arith.constant 0 : index
      %c0_33 = arith.constant 0 : index
      %51 = vector.load %arg7[%c0_32, %c0_33] : memref<1x128xf32, #tpu.memory_space<vmem>>, vector<1x128xf32>
      %52 = arith.addf %51, %45 : vector<1x128xf32>
      %53 = arith.mulf %45, %45 : vector<1x128xf32>
      %54 = arith.subf %50, %53 : vector<1x128xf32>
      %cst_34 = arith.constant 0.000000e+00 : f32
      %55 = vector.broadcast %cst_34 : f32 to vector<1x128xf32>
      %56 = arith.maximumf %54, %55 : vector<1x128xf32>
      %57 = vector.broadcast %52 : vector<1x128xf32> to vector<8x128xf32>
      %58 = arith.subf %41, %57 : vector<8x128xf32>
      %cst_35 = arith.constant 9.99999974E-6 : f32
      %59 = vector.broadcast %cst_35 : f32 to vector<1x128xf32>
      %60 = arith.addf %56, %59 : vector<1x128xf32>
      %61 = math.rsqrt %60 : vector<1x128xf32>
      %62 = vector.broadcast %61 : vector<1x128xf32> to vector<8x128xf32>
      %63 = arith.mulf %58, %62 : vector<8x128xf32>
      %c0_36 = arith.constant 0 : index
      %c0_37 = arith.constant 0 : index
      %64 = vector.load %arg8[%c0_36, %c0_37] : memref<8x128xf32, #tpu.memory_space<vmem>>, vector<8x128xf32>
      tpu.vector_store %arg8[%c0_36, %c0_37], %63 {strides = array<i32>} : memref<8x128xf32, #tpu.memory_space<vmem>>, vector<8x128xf32>,
    } else {
    }
    return
  }
  func.func @transform_0(%arg0: i32) -> (i32, i32) {
    %c0_i32 = arith.constant 0 : i32
    %c0_i32_0 = arith.constant 0 : i32
    return %c0_i32, %arg0 : i32, i32
  }
  func.func @transform_1(%arg0: i32) -> (i32, i32) {
    %c0_i32 = arith.constant 0 : i32
    %c0_i32_0 = arith.constant 0 : i32
    return %arg0, %c0_i32 : i32, i32
  }
  func.func @transform_2(%arg0: i32) -> (i32, i32) {
    %c0_i32 = arith.constant 0 : i32
    %c0_i32_0 = arith.constant 0 : i32
    %c0_i32_1 = arith.constant 0 : i32
    return %c0_i32, %c0_i32_0 : i32, i32
  }
  func.func @transform_3(%arg0: i32) -> (i32, i32) {
    %c0_i32 = arith.constant 0 : i32
    %c0_i32_0 = arith.constant 0 : i32
    %c0_i32_1 = arith.constant 0 : i32
    return %c0_i32, %c0_i32_0 : i32, i32
  }
  func.func @transform_4(%arg0: i32) -> (i32, i32) {
    %c0_i32 = arith.constant 0 : i32
    %c0_i32_0 = arith.constant 0 : i32
    %c0_i32_1 = arith.constant 0 : i32
    return %c0_i32, %c0_i32_0 : i32, i32
  }
  func.func @transform_5(%arg0: i32) -> (i32, i32) {
    %c0_i32 = arith.constant 0 : i32
    %c0_i32_0 = arith.constant 0 : i32
    %c0_i32_1 = arith.constant 0 : i32
    return %c0_i32, %c0_i32_0 : i32, i32
  }
  func.func @transform_6(%arg0: i32) -> (i32, i32) {
    %c0_i32 = arith.constant 0 : i32
    %c0_i32_0 = arith.constant 0 : i32
    %c0_i32_1 = arith.constant 0 : i32
    return %c0_i32, %c0_i32_0 : i32, i32
  }
  func.func @transform_7(%arg0: i32) -> (i32, i32) {
    %c0_i32 = arith.constant 0 : i32
    %c0_i32_0 = arith.constant 0 : i32
    %c0_i32_1 = arith.constant 0 : i32
    return %c0_i32, %c0_i32_0 : i32, i32
  }
}

</mosaic_0001>

<llo_original>
// kernel: tpu_custom_call.1
$region0: #{tpu_custom_call.1}
  #allocation0 [shape = 'u32[]', space=smem, size = 0x4, offset = 0x4, fixed_abs, tag = 'smem constant byte address 0x4 - core index']
  #allocation1 [shape = 'u32[72,128]{1,0:T(1,128)}', space=vmem, size = 0x9000, scoped, tag = 'internal scratch']
  #allocation2 [shape = 'f32[8,128]{1,0:T(8,128)}', space=vmem, size = 0x1000, scoped, tag = 'scratch operand']
  %s0 = inlined_call_operand.hbm [shape: f32[8,128], index: 0, kind: input, shape index: {}]
  %s1 = inlined_call_operand.hbm [shape: f32[128,128], index: 1, kind: input, shape index: {}]
  %s2 = inlined_call_operand.vmem [shape: f32[1,128], index: 2, kind: input, shape index: {}]
  %s3 = inlined_call_operand.hbm [shape: f32[128,128], index: 3, kind: input, shape index: {}]
  %s4 = inlined_call_operand.vmem [shape: f32[1,128], index: 4, kind: input, shape index: {}]
  %s5 = inlined_call_operand.hbm [shape: f32[128,128], index: 5, kind: input, shape index: {}]
  %s6 = inlined_call_operand.vmem [shape: f32[1,128], index: 6, kind: input, shape index: {}]
  %s7 = inlined_call_operand.hbm [shape: f32[8,128], index: 7, kind: output, shape index: {}]
  %s8 = sld [smem:[#allocation0]]
  $region62: #{tpu_custom_call.1} parent=0
    _
  %s10 = ssub.s32 1, %s8
  %s11 = scalar_select 0, %s10, %s8
  $region1: #{tpu_custom_call.1} parent=0
    #allocation3 [shape = 'u8[4096]{0}', space=vmem, size = 0x1000, scoped, tag = 'input window, operand 0, single buffered']
    #allocation4 [shape = 's32[1]{0}', space=sflag, size = 0x4, scoped, tag = 'scoped memory for tpu_custom_call.1']
    #allocation5 [shape = 's32[1]{0}', space=sflag, size = 0x4, scoped, tag = 'scoped memory for tpu_custom_call.1']
    #allocation6 [shape = 'u8[65536]{0}', space=vmem, size = 0x10000, scoped, tag = 'input window, operand 1, single buffered']
    #allocation7 [shape = 's32[1]{0}', space=sflag, size = 0x4, scoped, tag = 'scoped memory for tpu_custom_call.1']
    #allocation8 [shape = 'u8[65536]{0}', space=vmem, size = 0x10000, scoped, tag = 'input window, operand 3, single buffered']
    #allocation9 [shape = 'u8[65536]{0}', space=vmem, size = 0x10000, scoped, tag = 'input window, operand 5, single buffered']
    #allocation10 [shape = 's32[1]{0}', space=sflag, size = 0x4, scoped, tag = 'scoped memory for tpu_custom_call.1']
    #allocation11 [shape = 'u8[4096]{0}', space=vmem, size = 0x1000, scoped, tag = 'output window, operand 0, single buffered']
    %12 = vsyncpa [#allocation4], 0
    %13 = vsyncpa [#allocation7], 0
    %14 = vsyncpa [#allocation10], 0
    %15 = vsyncpa [#allocation5], 0
    // Predicated region
    $region2: #{tpu_custom_call.1} parent=1 // pred_check
      _
    $region3: #{tpu_custom_call.1} parent=1 // pred_check_branch
      %17 = sbr.rel (0) target = $region5
    $region4: #{tpu_custom_call.1} parent=1 // pred_region
      %19 = vsyncadd [#allocation4], 0
      %s21 = sshll.u32 %s0, 4
      %s22 = int_to_ptr.hbm [resolvable:$true] %s21
      %s23 = sshll.u32 [#allocation3], 4
      %s24 = int_to_ptr.vmem [resolvable:$true] %s23
      %26 = dma.hbm_to_vmem [thread:$0]  %s22, 128, %s24, [#allocation4]
    $region5: #{tpu_custom_call.1} parent=1 // pred_fallthru
      _
    // Predicated region
    $region6: #{tpu_custom_call.1} parent=1 // pred_check
      _
    $region7: #{tpu_custom_call.1} parent=1 // pred_check_branch
      %28 = sbr.rel (0) target = $region9
    $region8: #{tpu_custom_call.1} parent=1 // pred_region
      %30 = vsyncadd [#allocation7], 0
      %s31 = sshll.u32 %s1, 4
      %s32 = int_to_ptr.hbm [resolvable:$true] %s31
      %s33 = sshll.u32 [#allocation6], 4
      %s34 = int_to_ptr.vmem [resolvable:$true] %s33
      %39 = dma.hbm_to_vmem [thread:$0]  %s32, 2048, %s34, [#allocation7], 128, 128, 8
    $region9: #{tpu_custom_call.1} parent=1 // pred_fallthru
      _
    // Predicated region
    $region10: #{tpu_custom_call.1} parent=1 // pred_check
      _
    $region11: #{tpu_custom_call.1} parent=1 // pred_check_branch
      %41 = sbr.rel (0) target = $region13
    $region12: #{tpu_custom_call.1} parent=1 // pred_region
      _
    $region13: #{tpu_custom_call.1} parent=1 // pred_fallthru
      _
    // Predicated region
    $region14: #{tpu_custom_call.1} parent=1 // pred_check
      _
    $region15: #{tpu_custom_call.1} parent=1 // pred_check_branch
      %43 = sbr.rel (0) target = $region17
    $region16: #{tpu_custom_call.1} parent=1 // pred_region
      %45 = vsyncadd [#allocation7], 0
      %s46 = sshll.u32 %s3, 4
      %s47 = int_to_ptr.hbm [resolvable:$true] %s46
      %s48 = sshll.u32 [#allocation8], 4
      %s49 = int_to_ptr.vmem [resolvable:$true] %s48
      %54 = dma.hbm_to_vmem [thread:$0]  %s47, 2048, %s49, [#allocation7], 128, 128, 8
    $region17: #{tpu_custom_call.1} parent=1 // pred_fallthru
      _
    // Predicated region
    $region18: #{tpu_custom_call.1} parent=1 // pred_check
      _
    $region19: #{tpu_custom_call.1} parent=1 // pred_check_branch
      %56 = sbr.rel (0) target = $region21
    $region20: #{tpu_custom_call.1} parent=1 // pred_region
      _
    $region21: #{tpu_custom_call.1} parent=1 // pred_fallthru
      _
    // Predicated region
    $region22: #{tpu_custom_call.1} parent=1 // pred_check
      _
    $region23: #{tpu_custom_call.1} parent=1 // pred_check_branch
      %58 = sbr.rel (0) target = $region25
    $region24: #{tpu_custom_call.1} parent=1 // pred_region
      %60 = vsyncadd [#allocation10], 0
      %s61 = sshll.u32 %s5, 4
      %s62 = int_to_ptr.hbm [resolvable:$true] %s61
      %s63 = sshll.u32 [#allocation9], 4
      %s64 = int_to_ptr.vmem [resolvable:$true] %s63
      %69 = dma.hbm_to_vmem [thread:$0]  %s62, 2048, %s64, [#allocation10], 128, 128, 8
    $region25: #{tpu_custom_call.1} parent=1 // pred_fallthru
      _
    // Predicated region
    $region26: #{tpu_custom_call.1} parent=1 // pred_check
      _
    $region27: #{tpu_custom_call.1} parent=1 // pred_check_branch
      %71 = sbr.rel (0) target = $region29
    $region28: #{tpu_custom_call.1} parent=1 // pred_region
      _
    $region29: #{tpu_custom_call.1} parent=1 // pred_fallthru
      _
    // Predicated region
    $region30: #{tpu_custom_call.1} parent=1 // pred_check
      _
    $region31: #{tpu_custom_call.1} parent=1 // pred_check_branch
      %73 = sbr.rel (0) target = $region33
    $region32: #{tpu_custom_call.1} parent=1 // pred_region
      %75 = dma.done [#allocation4], 128
    $region33: #{tpu_custom_call.1} parent=1 // pred_fallthru
      _
    // Predicated region
    $region34: #{tpu_custom_call.1} parent=1 // pred_check
      _
    $region35: #{tpu_custom_call.1} parent=1 // pred_check_branch
      %77 = sbr.rel (0) target = $region37
    $region36: #{tpu_custom_call.1} parent=1 // pred_region
      %79 = dma.done [#allocation7], 2048
    $region37: #{tpu_custom_call.1} parent=1 // pred_fallthru
      _
    // Predicated region
    $region38: #{tpu_custom_call.1} parent=1 // pred_check
      _
    $region39: #{tpu_custom_call.1} parent=1 // pred_check_branch
      %81 = sbr.rel (0) target = $region41
    $region40: #{tpu_custom_call.1} parent=1 // pred_region
      %83 = dma.done [#allocation7], 2048
    $region41: #{tpu_custom_call.1} parent=1 // pred_fallthru
      _
    // Predicated region
    $region42: #{tpu_custom_call.1} parent=1 // pred_check
      _
    $region43: #{tpu_custom_call.1} parent=1 // pred_check_branch
      %85 = sbr.rel (0) target = $region45
    $region44: #{tpu_custom_call.1} parent=1 // pred_region
      %87 = dma.done [#allocation10], 2048
    $region45: #{tpu_custom_call.1} parent=1 // pred_fallthru
      _
    %p88 = scmp.eq.s32.totalorder 0, 0
    // Predicated region
    $region46: #{tpu_custom_call.1} parent=1 // pred_check
      %p89 = pneg %p88
    $region47: #{tpu_custom_call.1} parent=1 // pred_check_branch
      %91 = sbr.rel (%p89) target = $region49
    $region48: #{tpu_custom_call.1} parent=1 // pred_region
      %92 = vst [vmem:[#allocation2] sm:$0xff] 0.0
    $region49: #{tpu_custom_call.1} parent=1 // pred_fallthru
      _
    %v93 = vld [vmem:[#allocation2] sm:$0xff]
    %v94 = vld [vmem:[#allocation3] sm:$0xff]
    %v95 = vld [vmem:[#allocation6] sm:$0xff]
    %v96 = vld [vmem:[#allocation6 + $0x8] sm:$0xff]
    %v97 = vld [vmem:[#allocation6 + $0x10] sm:$0xff]
    %v98 = vld [vmem:[#allocation6 + $0x18] sm:$0xff]
    %v99 = vld [vmem:[#allocation6 + $0x20] sm:$0xff]
    %v100 = vld [vmem:[#allocation6 + $0x28] sm:$0xff]
    %v101 = vld [vmem:[#allocation6 + $0x30] sm:$0xff]
    %v102 = vld [vmem:[#allocation6 + $0x38] sm:$0xff]
    %v103 = vld [vmem:[#allocation6 + $0x40] sm:$0xff]
    %v104 = vld [vmem:[#allocation6 + $0x48] sm:$0xff]
    %v105 = vld [vmem:[#allocation6 + $0x50] sm:$0xff]
    %v106 = vld [vmem:[#allocation6 + $0x58] sm:$0xff]
    %v107 = vld [vmem:[#allocation6 + $0x60] sm:$0xff]
    %v108 = vld [vmem:[#allocation6 + $0x68] sm:$0xff]
    %v109 = vld [vmem:[#allocation6 + $0x70] sm:$0xff]
    %v110 = vld [vmem:[#allocation6 + $0x78] sm:$0xff]
    %111 = vmatpush.msra.mxu0 %v110
    %112 = vmatpush.msra.mxu0 %v109
    %113 = vmatpush.msra.mxu0 %v108
    %114 = vmatpush.msra.mxu0 %v107
    %115 = vmatpush.msra.mxu0 %v106
    %116 = vmatpush.msra.mxu0 %v105
    %117 = vmatpush.msra.mxu0 %v104
    %118 = vmatpush.msra.mxu0 %v103
    %119 = vmatpush.msra.mxu0 %v102
    %120 = vmatpush.msra.mxu0 %v101
    %121 = vmatpush.msra.mxu0 %v100
    %122 = vmatpush.msra.mxu0 %v99
    %123 = vmatpush.msra.mxu0 %v98
    %124 = vmatpush.msra.mxu0 %v97
    %125 = vmatpush.msra.mxu0 %v96
    %126 = vmatpush.msra.mxu0 %v95
    %127 = vmatmul.f32.gmra.mxu0 %v94
    %v128 = vpop.f32.mrf.mxu0
    %v129 = vadd.f32 0.0, %v128
    %130 = vdwg.mxu0
    %v131 = vadd.f32 %v93, %v129
    %132 = vst [vmem:[#allocation2] sm:$0xff] %v131
    // Predicated region
    $region50: #{tpu_custom_call.1} parent=1 // pred_check
      %p133 = pneg %p88
    $region51: #{tpu_custom_call.1} parent=1 // pred_check_branch
      %135 = sbr.rel (%p133) target = $region53
    $region52: #{tpu_custom_call.1} parent=1 // pred_region
      %v136 = vld [vmem:[#allocation2] sm:$0xff]
      %v137 = vld [vmem:[%s2] sm:$0x1]
      %v139 = vperm.slane %v137, 0
      %v141 = vadd.f32 %v136, %v139
      %v142 = vmax.f32 %v141, 0.0
      %v143 = vand.u32 2147483647, %v141
      %v144 = vsub.f32 0.0, %v143
      %v145 = vmul.f32 %v144, 1.442695
      %v146 = vpow.pop %v145
      %v147 = vadd.f32 %v146, 1.0
      %v148 = vlog2.pop %v147
      %v149 = vmul.f32 %v148, 0.6931472
      %v150 = vmul.f32 -0.5, %v146
      %v151 = vadd.f32 %v150, 1.0
      %v152 = vmul.f32 %v151, %v146
      %v153 = vand.u32 2147483647, %v146
      %vm154 = vcmp.lt.f32.partialorder %v153, 0.0004427343
      %v155 = vsel %vm154, %v152, %v149
      %v156 = vadd.f32 %v142, %v155
      %v157 = vld [vmem:[#allocation8] sm:$0xff]
      %v158 = vld [vmem:[#allocation8 + $0x8] sm:$0xff]
      %v159 = vld [vmem:[#allocation8 + $0x10] sm:$0xff]
      %v160 = vld [vmem:[#allocation8 + $0x18] sm:$0xff]
      %v161 = vld [vmem:[#allocation8 + $0x20] sm:$0xff]
      %v162 = vld [vmem:[#allocation8 + $0x28] sm:$0xff]
      %v163 = vld [vmem:[#allocation8 + $0x30] sm:$0xff]
      %v164 = vld [vmem:[#allocation8 + $0x38] sm:$0xff]
      %v165 = vld [vmem:[#allocation8 + $0x40] sm:$0xff]
      %v166 = vld [vmem:[#allocation8 + $0x48] sm:$0xff]
      %v167 = vld [vmem:[#allocation8 + $0x50] sm:$0xff]
      %v168 = vld [vmem:[#allocation8 + $0x58] sm:$0xff]
      %v169 = vld [vmem:[#allocation8 + $0x60] sm:$0xff]
      %v170 = vld [vmem:[#allocation8 + $0x68] sm:$0xff]
      %v171 = vld [vmem:[#allocation8 + $0x70] sm:$0xff]
      %v172 = vld [vmem:[#allocation8 + $0x78] sm:$0xff]
      %v173 = vld [vmem:[%s4] sm:$0x1]
      %v175 = vperm.slane %v173, 0
      %177 = vmatpush.msra.mxu0 %v172
      %178 = vmatpush.msra.mxu0 %v171
      %179 = vmatpush.msra.mxu0 %v170
      %180 = vmatpush.msra.mxu0 %v169
      %181 = vmatpush.msra.mxu0 %v168
      %182 = vmatpush.msra.mxu0 %v167
      %183 = vmatpush.msra.mxu0 %v166
      %184 = vmatpush.msra.mxu0 %v165
      %185 = vmatpush.msra.mxu0 %v164
      %186 = vmatpush.msra.mxu0 %v163
      %187 = vmatpush.msra.mxu0 %v162
      %188 = vmatpush.msra.mxu0 %v161
      %189 = vmatpush.msra.mxu0 %v160
      %190 = vmatpush.msra.mxu0 %v159
      %191 = vmatpush.msra.mxu0 %v158
      %192 = vmatpush.msra.mxu0 %v157
      %193 = vmatmul.f32.gmra.mxu0 %v156
      %v194 = vpop.f32.mrf.mxu0
      %v195 = vadd.f32 %v175, %v194
      %196 = vdwg.mxu0
      %v197 = vmax.f32 %v195, 0.0
      %v198 = vand.u32 2147483647, %v195
      %v199 = vsub.f32 0.0, %v198
      %v200 = vmul.f32 %v199, 1.442695
      %v201 = vpow.pop %v200
      %v202 = vadd.f32 %v201, 1.0
      %v203 = vlog2.pop %v202
      %v204 = vmul.f32 %v203, 0.6931472
      %v205 = vmul.f32 -0.5, %v201
      %v206 = vadd.f32 %v205, 1.0
      %v207 = vmul.f32 %v206, %v201
      %v208 = vand.u32 2147483647, %v201
      %vm209 = vcmp.lt.f32.partialorder %v208, 0.0004427343
      %v210 = vsel %vm209, %v207, %v204
      %v211 = vadd.f32 %v197, %v210
      %v212 = vld [vmem:[#allocation9] sm:$0xff]
      %v213 = vld [vmem:[#allocation9 + $0x8] sm:$0xff]
      %v214 = vld [vmem:[#allocation9 + $0x10] sm:$0xff]
      %v215 = vld [vmem:[#allocation9 + $0x18] sm:$0xff]
      %v216 = vld [vmem:[#allocation9 + $0x20] sm:$0xff]
      %v217 = vld [vmem:[#allocation9 + $0x28] sm:$0xff]
      %v218 = vld [vmem:[#allocation9 + $0x30] sm:$0xff]
      %v219 = vld [vmem:[#allocation9 + $0x38] sm:$0xff]
      %v220 = vld [vmem:[#allocation9 + $0x40] sm:$0xff]
      %v221 = vld [vmem:[#allocation9 + $0x48] sm:$0xff]
      %v222 = vld [vmem:[#allocation9 + $0x50] sm:$0xff]
      %v223 = vld [vmem:[#allocation9 + $0x58] sm:$0xff]
      %v224 = vld [vmem:[#allocation9 + $0x60] sm:$0xff]
      %v225 = vld [vmem:[#allocation9 + $0x68] sm:$0xff]
      %v226 = vld [vmem:[#allocation9 + $0x70] sm:$0xff]
      %v227 = vld [vmem:[#allocation9 + $0x78] sm:$0xff]
      %228 = vmatpush.msra.mxu0 %v227
      %229 = vmatpush.msra.mxu0 %v226
      %230 = vmatpush.msra.mxu0 %v225
      %231 = vmatpush.msra.mxu0 %v224
      %232 = vmatpush.msra.mxu0 %v223
      %233 = vmatpush.msra.mxu0 %v222
      %234 = vmatpush.msra.mxu0 %v221
      %235 = vmatpush.msra.mxu0 %v220
      %236 = vmatpush.msra.mxu0 %v219
      %237 = vmatpush.msra.mxu0 %v218
      %238 = vmatpush.msra.mxu0 %v217
      %239 = vmatpush.msra.mxu0 %v216
      %240 = vmatpush.msra.mxu0 %v215
      %241 = vmatpush.msra.mxu0 %v214
      %242 = vmatpush.msra.mxu0 %v213
      %243 = vmatpush.msra.mxu0 %v212
      %244 = vmatmul.f32.gmra.mxu0 %v211
      %v245 = vpop.f32.mrf.mxu0
      %v246 = vadd.f32 0.0, %v245
      %247 = vdwg.mxu0
      %v248 = vld [vmem:[%s6] sm:$0x1]
      %v250 = vperm.slane %v248, 0
      %v252 = vadd.f32 %v246, %v250
      %v253 = vrot.slane %v246, 4
      %v254 = vadd.f32 %v246, %v253
      %v255 = vrot.slane %v254, 2
      %v256 = vadd.f32 %v254, %v255
      %v257 = vrot.slane %v256, 1
      %v258 = vadd.f32 %v256, %v257
      %v259 = vmul.f32 %v258, 0.125
      %v260 = vmul.f32 %v246, %v246
      %v261 = vrot.slane %v260, 4
      %v262 = vadd.f32 %v260, %v261
      %v263 = vrot.slane %v262, 2
      %v264 = vadd.f32 %v262, %v263
      %v265 = vrot.slane %v264, 1
      %v266 = vadd.f32 %v264, %v265
      %v267 = vmul.f32 %v266, 0.125
      %v268 = vadd.f32 %v248, %v259
      %v269 = vmul.f32 %v259, %v259
      %v270 = vsub.f32 %v267, %v269
      %v271 = vmax.f32 %v270, 0.0
      %v273 = vperm.slane %v268, 0
      %v275 = vsub.f32 %v252, %v273
      %v276 = vadd.f32 %v271, 1e-05
      %v277 = vrsqrt.pop %v276
      %v278 = vmul.f32 %v277, %v276
      %v279 = vmul.f32 %v278, %v277
      %v280 = vmul.f32 0.5, %v279
      %v281 = vsub.f32 1.5, %v280
      %v282 = vmul.f32 %v277, %v281
      %vm283 = vweird.f32 %v276
      %vm284 = vweird.f32 %v277
      %vm285 = vmor %vm283, %vm284
      %v286 = vsel %vm285, %v277, %v282
      %v287 = vmul.f32 %v275, %v286
      %288 = vst [vmem:[#allocation11] sm:$0xff] %v287
    $region53: #{tpu_custom_call.1} parent=1 // pred_fallthru
      _
    // Predicated region
    $region54: #{tpu_custom_call.1} parent=1 // pred_check
      _
    $region55: #{tpu_custom_call.1} parent=1 // pred_check_branch
      %290 = sbr.rel (0) target = $region57
    $region56: #{tpu_custom_call.1} parent=1 // pred_region
      %292 = vsyncadd [#allocation5], 0
      %s294 = sshll.u32 [#allocation11], 4
      %s295 = int_to_ptr.vmem [resolvable:$true] %s294
      %s296 = sshll.u32 %s7, 4
      %s297 = int_to_ptr.hbm [resolvable:$true] %s296
      %299 = dma.vmem_to_hbm [thread:$0]  %s295, 128, %s297, [#allocation5]
    $region57: #{tpu_custom_call.1} parent=1 // pred_fallthru
      _
    // Predicated region
    $region58: #{tpu_custom_call.1} parent=1 // pred_check
      _
    $region59: #{tpu_custom_call.1} parent=1 // pred_check_branch
      %301 = sbr.rel (0) target = $region61
    $region60: #{tpu_custom_call.1} parent=1 // pred_region
      %303 = dma.done [#allocation5], 128
    $region61: #{tpu_custom_call.1} parent=1 // pred_fallthru
      _
    %304 = vsyncpa [#allocation4], 1
    %305 = vsyncpa [#allocation7], 1
    %306 = vsyncpa [#allocation10], 1
    %307 = vsyncpa [#allocation5], 1

</llo_original>
